<compile_context>
chip_gen: v7x
topology: tpu7x:2x2x1
jax: 0.10.0
libtpu: 0.0.40
codegen_flags: <defaults>
</compile_context>

<pallas_src>
import jax
import jax.numpy as jnp
from jax.experimental import pallas as pl
from jax.experimental.pallas import tpu as pltpu

IN_FEATURES = 50


def _round_up(n, m):
    return ((n + m - 1) // m) * m


def _mlp_kernel(x_ref, w1_ref, b1_ref, w2_ref, b2_ref, w3_ref, b3_ref, o_ref):
    # fc1 in f32: K=50 so the extra MXU passes are nearly free and accuracy improves.
    x = x_ref[...]
    h1 = jnp.tanh(
        jnp.dot(x, w1_ref[...], preferred_element_type=jnp.float32) + b1_ref[...]
    )
    # fc2 / fc3: bf16 operands feed the MXU, f32 accumulate, f32 bias + tanh.
    h2 = jnp.tanh(
        jnp.dot(h1.astype(jnp.bfloat16), w2_ref[...],
                preferred_element_type=jnp.float32) + b2_ref[...]
    )
    h3 = jnp.tanh(
        jnp.dot(h2.astype(jnp.bfloat16), w3_ref[...],
                preferred_element_type=jnp.float32) + b3_ref[...]
    )
    # TODO(synk): for E < 128 a lane-dense (>=128-wide) folded output store would
    # avoid masked vst.msk partial stores; kept the natural (TB, E) layout for
    # lowering robustness (E >= 128 is already lane-dense).
    o_ref[...] = h3.astype(o_ref.dtype)


def _choose_batch_tile(B, E):
    """E-dependent batch tile: ~14 MiB working set, clamped to 256..1024,
    >=4 grid steps for large batches (pipelining + v7x megacore), minimal padding."""
    e_pad = _round_up(E, 128)
    # Per-row VMEM bytes: double-buffered x tile (50 lanes pad to 128, f32),
    # double-buffered f32 out tile, plus ~16 B/elem of h1/h2/h3 + bf16 temporaries.
    bytes_per_row = 2 * 128 * 4 + 2 * e_pad * 4 + 16 * e_pad
    tb = (14 * 1024 * 1024) // bytes_per_row
    tb = max(256, min(1024, tb))
    min_steps = 4 if B >= 4 * 256 else 1
    num_steps = max(pl.cdiv(B, tb), min_steps)
    return _round_up(max(pl.cdiv(B, num_steps), 8), 8)


def prepare_params(params):
    """One-time conversion to kernel layout/dtypes (hoisted out of the forward
    path so per-call casts don't add an extra HBM round-trip under jit)."""
    return {
        "w1": params["w1"].astype(jnp.float32),           # (50, E) f32
        "b1": params["b1"].reshape(1, -1).astype(jnp.float32),
        "w2": params["w2"].astype(jnp.bfloat16),           # (E, E) bf16
        "b2": params["b2"].reshape(1, -1).astype(jnp.float32),
        "w3": params["w3"].astype(jnp.bfloat16),           # (E, E) bf16
        "b3": params["b3"].reshape(1, -1).astype(jnp.float32),
    }


def string_embedding_forward(x, prepared, *, out_dtype=jnp.float32, block_b=None):
    """x: (B, 50) float32. prepared: output of prepare_params. Returns (B, E)."""
    w1, b1 = prepared["w1"], prepared["b1"]
    w2, b2 = prepared["w2"], prepared["b2"]
    w3, b3 = prepared["w3"], prepared["b3"]

    B = x.shape[0]
    E = w1.shape[1]
    e_pad = _round_up(E, 128)

    TB = block_b if block_b is not None else _choose_batch_tile(B, E)
    B_pad = _round_up(B, TB)
    if B_pad != B:
        x = jnp.pad(x, ((0, B_pad - B), (0, 0)))

    grid = (B_pad // TB,)

    def const_spec(shape):
        # Full-array constant block: fetched once, VMEM-resident, single-buffered.
        return pl.BlockSpec(shape, lambda i: (0, 0), pipeline_mode=pl.Buffered(1))

    out_itemsize = jnp.dtype(out_dtype).itemsize

    # Explicit VMEM budget (inputs/outputs double-buffered, weights single, temps).
    weight_bytes = (
        _round_up(IN_FEATURES, 8) * e_pad * 4      # w1 f32
        + 2 * _round_up(E, 16) * e_pad * 2         # w2, w3 bf16
        + 3 * 8 * e_pad * 4                        # biases (sublane-padded)
    )
    need = (
        2 * TB * 128 * 4                           # x tiles
        + 2 * TB * e_pad * out_itemsize            # out tiles
        + weight_bytes
        + 16 * TB * e_pad                          # h1/h2/h3 + bf16 temporaries
    )
    vmem_limit = int(min(max(need + (4 << 20), 32 << 20), 100 << 20))

    cost = pl.CostEstimate(
        flops=2 * B * E * (IN_FEATURES + 2 * E) + 3 * B * E,
        transcendentals=3 * B * E,
        bytes_accessed=(B * IN_FEATURES * 4 + B * E * out_itemsize
                        + IN_FEATURES * E * 4 + 2 * E * E * 2 + 3 * E * 4),
    )

    out = pl.pallas_call(
        _mlp_kernel,
        out_shape=jax.ShapeDtypeStruct((B_pad, E), out_dtype),
        grid=grid,
        in_specs=[
            pl.BlockSpec((TB, IN_FEATURES), lambda i: (i, 0)),  # x: tiled over batch
            const_spec(w1.shape),
            const_spec(b1.shape),
            const_spec(w2.shape),
            const_spec(b2.shape),
            const_spec(w3.shape),
            const_spec(b3.shape),
        ],
        out_specs=pl.BlockSpec((TB, E), lambda i: (i, 0)),
        compiler_params=pltpu.CompilerParams(
            dimension_semantics=("parallel",),      # megacore sharding on v7x
            vmem_limit_bytes=vmem_limit,
        ),
        cost_estimate=cost,
    )(x, w1, b1, w2, b2, w3, b3)

    return out[:B]


def init_params(key, embedding_size, in_features=IN_FEATURES):
    """Deterministic synthetic parameter init matching nn.Linear shapes (f32)."""
    ks = jax.random.split(key, 6)
    scale1 = 1.0 / jnp.sqrt(in_features)
    scaleE = 1.0 / jnp.sqrt(embedding_size)
    return {
        # stored as (in, out) == transpose of torch Linear weight (out, in)
        "w1": jax.random.uniform(ks[0], (in_features, embedding_size),
                                 jnp.float32, -scale1, scale1),
        "b1": jax.random.uniform(ks[1], (1, embedding_size),
                                 jnp.float32, -scale1, scale1),
        "w2": jax.random.uniform(ks[2], (embedding_size, embedding_size),
                                 jnp.float32, -scaleE, scaleE),
        "b2": jax.random.uniform(ks[3], (1, embedding_size),
                                 jnp.float32, -scaleE, scaleE),
        "w3": jax.random.uniform(ks[4], (embedding_size, embedding_size),
                                 jnp.float32, -scaleE, scaleE),
        "b3": jax.random.uniform(ks[5], (1, embedding_size),
                                 jnp.float32, -scaleE, scaleE),
    }


def reference_forward(x, p):
    h1 = jnp.tanh(x @ p["w1"] + p["b1"])
    h2 = jnp.tanh(h1 @ p["w2"] + p["b2"])
    return jnp.tanh(h2 @ p["w3"] + p["b3"])


if __name__ == "__main__":
    key = jax.random.PRNGKey(0)
    k_x, k_p = jax.random.split(key)

    batch = 8
    embedding_size = 32
    x = jax.random.normal(k_x, (batch, IN_FEATURES), dtype=jnp.float32)
    params = init_params(k_p, embedding_size)
    prepared = prepare_params(params)   # one-time cast, hoisted out of forward

    out = string_embedding_forward(x, prepared)
    out = jax.block_until_ready(out)

    ref = reference_forward(x, params)
    assert out.shape == (batch, embedding_size)
    # fc1 f32, fc2/fc3 bf16 operands (f32 accumulate) -> relaxed tolerance vs f32 ref.
    assert jnp.allclose(out, ref, atol=2e-2, rtol=2e-2), (
        float(jnp.max(jnp.abs(out - ref)))
    )

    print("KERNEL_OK")
</pallas_src>

<mosaic_0001>
module attributes {stable_mosaic.version = 11 : i64} {
  func.func @_mlp_kernel(%arg0: i32, %arg1: memref<8x50xf32, #tpu.memory_space<vmem>>, %arg2: memref<50x32xf32, #tpu.memory_space<vmem>>, %arg3: memref<1x32xf32, #tpu.memory_space<vmem>>, %arg4: memref<32x32xbf16, #tpu.memory_space<vmem>>, %arg5: memref<1x32xf32, #tpu.memory_space<vmem>>, %arg6: memref<32x32xbf16, #tpu.memory_space<vmem>>, %arg7: memref<1x32xf32, #tpu.memory_space<vmem>>, %arg8: memref<8x32xf32, #tpu.memory_space<vmem>>) attributes {dimension_semantics = [#tpu.dimension_semantics<parallel>], iteration_bounds = array<i64: 1>, scalar_prefetch = 0 : i64, scratch_operands = 0 : i64, tpu.core_type = #tpu.core_type<tc>, window_params = [{transform_indices = @transform_0, window_bounds = array<i64: 8, 50>}, {pipeline_mode = #tpu.pipeline_mode<synchronous>, transform_indices = @transform_1, window_bounds = array<i64: 50, 32>}, {pipeline_mode = #tpu.pipeline_mode<synchronous>, transform_indices = @transform_2, window_bounds = array<i64: 1, 32>}, {pipeline_mode = #tpu.pipeline_mode<synchronous>, transform_indices = @transform_3, window_bounds = array<i64: 32, 32>}, {pipeline_mode = #tpu.pipeline_mode<synchronous>, transform_indices = @transform_4, window_bounds = array<i64: 1, 32>}, {pipeline_mode = #tpu.pipeline_mode<synchronous>, transform_indices = @transform_5, window_bounds = array<i64: 32, 32>}, {pipeline_mode = #tpu.pipeline_mode<synchronous>, transform_indices = @transform_6, window_bounds = array<i64: 1, 32>}, {transform_indices = @transform_7, window_bounds = array<i64: 8, 32>}]} {
    %c0 = arith.constant 0 : index
    %c0_0 = arith.constant 0 : index
    %0 = vector.load %arg1[%c0, %c0_0] : memref<8x50xf32, #tpu.memory_space<vmem>>, vector<8x50xf32>
    %c0_1 = arith.constant 0 : index
    %c0_2 = arith.constant 0 : index
    %1 = vector.load %arg2[%c0_1, %c0_2] : memref<50x32xf32, #tpu.memory_space<vmem>>, vector<50x32xf32>
    %cst = arith.constant dense<0.000000e+00> : vector<8x32xf32>
    %2 = tpu.matmul %0, %1, %cst {dimension_numbers = #tpu.dot_dimension_numbers<[1], [0], [0], [1], [0, 0, 1, 1], [], []>} : vector<8x50xf32>, vector<50x32xf32>, vector<8x32xf32> -> vector<8x32xf32>
    %c0_3 = arith.constant 0 : index
    %c0_4 = arith.constant 0 : index
    %3 = vector.load %arg3[%c0_3, %c0_4] : memref<1x32xf32, #tpu.memory_space<vmem>>, vector<1x32xf32>
    %4 = vector.broadcast %3 : vector<1x32xf32> to vector<8x32xf32>
    %5 = arith.addf %2, %4 : vector<8x32xf32>
    %6 = math.tanh %5 : vector<8x32xf32>
    %7 = arith.truncf %6 : vector<8x32xf32> to vector<8x32xbf16>
    %c0_5 = arith.constant 0 : index
    %c0_6 = arith.constant 0 : index
    %8 = vector.load %arg4[%c0_5, %c0_6] : memref<32x32xbf16, #tpu.memory_space<vmem>>, vector<32x32xbf16>
    %cst_7 = arith.constant dense<0.000000e+00> : vector<8x32xf32>
    %9 = tpu.matmul %7, %8, %cst_7 {dimension_numbers = #tpu.dot_dimension_numbers<[1], [0], [0], [1], [0, 0, 1, 1], [], []>} : vector<8x32xbf16>, vector<32x32xbf16>, vector<8x32xf32> -> vector<8x32xf32>
    %c0_8 = arith.constant 0 : index
    %c0_9 = arith.constant 0 : index
    %10 = vector.load %arg5[%c0_8, %c0_9] : memref<1x32xf32, #tpu.memory_space<vmem>>, vector<1x32xf32>
    %11 = vector.broadcast %10 : vector<1x32xf32> to vector<8x32xf32>
    %12 = arith.addf %9, %11 : vector<8x32xf32>
    %13 = math.tanh %12 : vector<8x32xf32>
    %14 = arith.truncf %13 : vector<8x32xf32> to vector<8x32xbf16>
    %c0_10 = arith.constant 0 : index
    %c0_11 = arith.constant 0 : index
    %15 = vector.load %arg6[%c0_10, %c0_11] : memref<32x32xbf16, #tpu.memory_space<vmem>>, vector<32x32xbf16>
    %cst_12 = arith.constant dense<0.000000e+00> : vector<8x32xf32>
    %16 = tpu.matmul %14, %15, %cst_12 {dimension_numbers = #tpu.dot_dimension_numbers<[1], [0], [0], [1], [0, 0, 1, 1], [], []>} : vector<8x32xbf16>, vector<32x32xbf16>, vector<8x32xf32> -> vector<8x32xf32>
    %c0_13 = arith.constant 0 : index
    %c0_14 = arith.constant 0 : index
    %17 = vector.load %arg7[%c0_13, %c0_14] : memref<1x32xf32, #tpu.memory_space<vmem>>, vector<1x32xf32>
    %18 = vector.broadcast %17 : vector<1x32xf32> to vector<8x32xf32>
    %19 = arith.addf %16, %18 : vector<8x32xf32>
    %20 = math.tanh %19 : vector<8x32xf32>
    %c0_15 = arith.constant 0 : index
    %c0_16 = arith.constant 0 : index
    %21 = vector.load %arg8[%c0_15, %c0_16] : memref<8x32xf32, #tpu.memory_space<vmem>>, vector<8x32xf32>
    tpu.vector_store %arg8[%c0_15, %c0_16], %20 {strides = array<i32>} : memref<8x32xf32, #tpu.memory_space<vmem>>, vector<8x32xf32>,
    return
  }
  func.func @transform_0(%arg0: i32) -> (i32, i32) {
    %c0_i32 = arith.constant 0 : i32
    %c0_i32_0 = arith.constant 0 : i32
    return %arg0, %c0_i32 : i32, i32
  }
  func.func @transform_1(%arg0: i32) -> (i32, i32) {
    %c0_i32 = arith.constant 0 : i32
    %c0_i32_0 = arith.constant 0 : i32
    %c0_i32_1 = arith.constant 0 : i32
    return %c0_i32, %c0_i32_0 : i32, i32
  }
  func.func @transform_2(%arg0: i32) -> (i32, i32) {
    %c0_i32 = arith.constant 0 : i32
    %c0_i32_0 = arith.constant 0 : i32
    %c0_i32_1 = arith.constant 0 : i32
    return %c0_i32, %c0_i32_0 : i32, i32
  }
  func.func @transform_3(%arg0: i32) -> (i32, i32) {
    %c0_i32 = arith.constant 0 : i32
    %c0_i32_0 = arith.constant 0 : i32
    %c0_i32_1 = arith.constant 0 : i32
    return %c0_i32, %c0_i32_0 : i32, i32
  }
  func.func @transform_4(%arg0: i32) -> (i32, i32) {
    %c0_i32 = arith.constant 0 : i32
    %c0_i32_0 = arith.constant 0 : i32
    %c0_i32_1 = arith.constant 0 : i32
    return %c0_i32, %c0_i32_0 : i32, i32
  }
  func.func @transform_5(%arg0: i32) -> (i32, i32) {
    %c0_i32 = arith.constant 0 : i32
    %c0_i32_0 = arith.constant 0 : i32
    %c0_i32_1 = arith.constant 0 : i32
    return %c0_i32, %c0_i32_0 : i32, i32
  }
  func.func @transform_6(%arg0: i32) -> (i32, i32) {
    %c0_i32 = arith.constant 0 : i32
    %c0_i32_0 = arith.constant 0 : i32
    %c0_i32_1 = arith.constant 0 : i32
    return %c0_i32, %c0_i32_0 : i32, i32
  }
  func.func @transform_7(%arg0: i32) -> (i32, i32) {
    %c0_i32 = arith.constant 0 : i32
    %c0_i32_0 = arith.constant 0 : i32
    return %arg0, %c0_i32 : i32, i32
  }
}

</mosaic_0001>

<llo_original>
// kernel: tpu_custom_call.1
$region0: #{tpu_custom_call.1}
  #allocation0 [shape = 'u32[]', space=smem, size = 0x4, offset = 0x4, fixed_abs, tag = 'smem constant byte address 0x4 - core index']
  #allocation1 [shape = 'u32[144,128]{1,0:T(1,128)}', space=vmem, size = 0x12000, scoped, tag = 'internal scratch']
  %s0 = inlined_call_operand.vmem [shape: f32[8,50], index: 0, kind: input, shape index: {}]
  %s1 = inlined_call_operand.vmem [shape: f32[50,32], index: 1, kind: input, shape index: {}]
  %s2 = inlined_call_operand.vmem [shape: f32[1,32], index: 2, kind: input, shape index: {}]
  %s3 = inlined_call_operand.vmem [shape: bf16[32,32], index: 3, kind: input, shape index: {}]
  %s4 = inlined_call_operand.vmem [shape: f32[1,32], index: 4, kind: input, shape index: {}]
  %s5 = inlined_call_operand.vmem [shape: bf16[32,32], index: 5, kind: input, shape index: {}]
  %s6 = inlined_call_operand.vmem [shape: f32[1,32], index: 6, kind: input, shape index: {}]
  %s7 = inlined_call_operand.hbm [shape: f32[8,32], index: 7, kind: output, shape index: {}]
  %s8 = sld [smem:[#allocation0]]
  $region38: #{tpu_custom_call.1} parent=0
    _
  %s10 = ssub.s32 1, %s8
  %s11 = scalar_select 0, %s10, %s8
  $region1: #{tpu_custom_call.1} parent=0
    #allocation2 [shape = 'u8[4096]{0}', space=vmem, size = 0x1000, scoped, tag = 'output window, operand 0, single buffered']
    #allocation3 [shape = 's32[1]{0}', space=sflag, size = 0x4, scoped, tag = 'scoped memory for tpu_custom_call.1']
    %12 = vsyncpa [#allocation3], 0
    // Predicated region
    $region2: #{tpu_custom_call.1} parent=1 // pred_check
      _
    $region3: #{tpu_custom_call.1} parent=1 // pred_check_branch
      %14 = sbr.rel (0) target = $region5
    $region4: #{tpu_custom_call.1} parent=1 // pred_region
      _
    $region5: #{tpu_custom_call.1} parent=1 // pred_fallthru
      _
    // Predicated region
    $region6: #{tpu_custom_call.1} parent=1 // pred_check
      _
    $region7: #{tpu_custom_call.1} parent=1 // pred_check_branch
      %16 = sbr.rel (0) target = $region9
    $region8: #{tpu_custom_call.1} parent=1 // pred_region
      _
    $region9: #{tpu_custom_call.1} parent=1 // pred_fallthru
      _
    // Predicated region
    $region10: #{tpu_custom_call.1} parent=1 // pred_check
      _
    $region11: #{tpu_custom_call.1} parent=1 // pred_check_branch
      %18 = sbr.rel (0) target = $region13
    $region12: #{tpu_custom_call.1} parent=1 // pred_region
      _
    $region13: #{tpu_custom_call.1} parent=1 // pred_fallthru
      _
    // Predicated region
    $region14: #{tpu_custom_call.1} parent=1 // pred_check
      _
    $region15: #{tpu_custom_call.1} parent=1 // pred_check_branch
      %20 = sbr.rel (0) target = $region17
    $region16: #{tpu_custom_call.1} parent=1 // pred_region
      _
    $region17: #{tpu_custom_call.1} parent=1 // pred_fallthru
      _
    // Predicated region
    $region18: #{tpu_custom_call.1} parent=1 // pred_check
      _
    $region19: #{tpu_custom_call.1} parent=1 // pred_check_branch
      %22 = sbr.rel (0) target = $region21
    $region20: #{tpu_custom_call.1} parent=1 // pred_region
      _
    $region21: #{tpu_custom_call.1} parent=1 // pred_fallthru
      _
    // Predicated region
    $region22: #{tpu_custom_call.1} parent=1 // pred_check
      _
    $region23: #{tpu_custom_call.1} parent=1 // pred_check_branch
      %24 = sbr.rel (0) target = $region25
    $region24: #{tpu_custom_call.1} parent=1 // pred_region
      _
    $region25: #{tpu_custom_call.1} parent=1 // pred_fallthru
      _
    // Predicated region
    $region26: #{tpu_custom_call.1} parent=1 // pred_check
      _
    $region27: #{tpu_custom_call.1} parent=1 // pred_check_branch
      %26 = sbr.rel (0) target = $region29
    $region28: #{tpu_custom_call.1} parent=1 // pred_region
      _
    $region29: #{tpu_custom_call.1} parent=1 // pred_fallthru
      _
    %v28 = vld [vmem:[%s0] sm:$0xff]
    %v29 = vld [vmem:[%s1] sm:$0xff]
    %v30 = vld [vmem:[%s1 + $0x8] sm:$0xff]
    %v31 = vld [vmem:[%s1 + $0x10] sm:$0xff]
    %v32 = vld [vmem:[%s1 + $0x18] sm:$0xff]
    %v33 = vld [vmem:[%s1 + $0x20] sm:$0xff]
    %v34 = vld [vmem:[%s1 + $0x28] sm:$0xff]
    %v35 = vld [vmem:[%s1 + $0x30] sm:$0x3]
    %v36 = vld [vmem:[%s2] sm:$0x1]
    %v38 = vlaneseq
    %v39 = vshrl.u32 %v38, 7
    %v40 = vsub.s32 0, %v39
    %v41 = vrot.slane %v36, %v40
    %vm43 = vcmask 408576
    %v45 = vsel %vm43, %v28, 0
    %vm47 = vcmask 1041408
    %v49 = vsel %vm47, %v35, 0
    %51 = vmatprep.subr.mxu0 0.0
    %52 = vmatpush1.msra.mxu0 %v29
    %53 = vmatprep.subr.mxu0 0.0
    %54 = vmatpush1.msra.mxu0 %v30
    %55 = vmatprep.subr.mxu0 0.0
    %56 = vmatpush1.msra.mxu0 %v31
    %57 = vmatprep.subr.mxu0 0.0
    %58 = vmatpush1.msra.mxu0 %v32
    %59 = vmatprep.subr.mxu0 0.0
    %60 = vmatpush1.msra.mxu0 %v33
    %61 = vmatprep.subr.mxu0 0.0
    %62 = vmatpush1.msra.mxu0 %v34
    %63 = vmatprep.subr.mxu0 0.0
    %64 = vmatpush1.msra.mxu0 %v49
    %65 = vmatprep.subr.mxu0 0.0
    %66 = vmatpush1.msra.mxu0 0.0
    %67 = vmatprep.subr.mxu0 0.0
    %68 = vmatpush1.msra.mxu0 0.0
    %69 = vmatprep.subr.mxu0 0.0
    %70 = vmatpush1.msra.mxu0 0.0
    %71 = vmatprep.subr.mxu0 0.0
    %72 = vmatpush1.msra.mxu0 0.0
    %73 = vmatprep.subr.mxu0 0.0
    %74 = vmatpush1.msra.mxu0 0.0
    %75 = vmatprep.subr.mxu0 0.0
    %76 = vmatpush1.msra.mxu0 0.0
    %77 = vmatprep.subr.mxu0 0.0
    %78 = vmatpush1.msra.mxu0 0.0
    %79 = vmatprep.subr.mxu0 0.0
    %80 = vmatpush1.msra.mxu0 0.0
    %81 = vmatprep.subr.mxu0 0.0
    %82 = vmatpush1.msra.mxu0 0.0
    %83 = vmatprep.subr.mxu0 0.0
    %84 = vmatpush1.msra.mxu0 0.0
    %85 = vmatprep.subr.mxu0 0.0
    %86 = vmatpush1.msra.mxu0 0.0
    %87 = vmatprep.subr.mxu0 0.0
    %88 = vmatpush1.msra.mxu0 0.0
    %89 = vmatprep.subr.mxu0 0.0
    %90 = vmatpush1.msra.mxu0 0.0
    %91 = vmatprep.subr.mxu0 0.0
    %92 = vmatpush1.msra.mxu0 0.0
    %93 = vmatprep.subr.mxu0 0.0
    %94 = vmatpush1.msra.mxu0 0.0
    %95 = vmatprep.subr.mxu0 0.0
    %96 = vmatpush1.msra.mxu0 0.0
    %97 = vmatprep.subr.mxu0 0.0
    %98 = vmatpush1.msra.mxu0 0.0
    %99 = vmatprep.subr.mxu0 0.0
    %100 = vmatpush1.msra.mxu0 0.0
    %101 = vmatprep.subr.mxu0 0.0
    %102 = vmatpush1.msra.mxu0 0.0
    %103 = vmatprep.subr.mxu0 0.0
    %104 = vmatpush1.msra.mxu0 0.0
    %105 = vmatprep.subr.mxu0 0.0
    %106 = vmatpush1.msra.mxu0 0.0
    %107 = vmatprep.subr.mxu0 0.0
    %108 = vmatpush1.msra.mxu0 0.0
    %109 = vmatprep.subr.mxu0 0.0
    %110 = vmatpush1.msra.mxu0 0.0
    %111 = vmatprep.subr.mxu0 0.0
    %112 = vmatpush1.msra.mxu0 0.0
    %113 = vmatprep.subr.mxu0 0.0
    %114 = vmatpush1.msra.mxu0 0.0
    %115 = vmatprep.mubr.f32.mxu0 0.0
    %116 = vmatmul.mubr.f32.gmra.mrb[0].mxu0 %v45
    %v117 = vpop.f32.mrb[0].mxu0
    %v118 = vadd.f32 %v41, %v117
    %v119 = vpop.f32.mrb[0].mxu0
    %120 = vdwg.mxu0
    %v121 = vtanh.pop %v118
    %v122 = vpack.c.bf16 %v121, %v121
    %v123 = vld [vmem:[%s3] sm:$0xf]
    %v124 = vld [vmem:[%s3 + $0x4] sm:$0xf]
    %v125 = vld [vmem:[%s3 + $0x8] sm:$0xf]
    %v126 = vld [vmem:[%s3 + $0xc] sm:$0xf]
    %v127 = vld [vmem:[%s4] sm:$0x1]
    %v129 = vlaneseq
    %v130 = vshrl.u32 %v129, 7
    %v131 = vsub.s32 0, %v130
    %v132 = vrot.slane %v127, %v131
    %v138 = vunpack.c.l.b16 %v123
    %v139 = vunpack.c.l.b16 %v124
    %v140 = vunpack.c.l.b16 %v125
    %v141 = vunpack.c.l.b16 %v126
    %v142 = vpack.c.b16 %v139, %v138
    %v143 = vpack.c.b16 %v141, %v140
    %vm146 = vcmask 261120
    %v148 = vsel %vm146, %v122, 0
    %150 = vmatprep.subr.bf16.mxu0 0
    %151 = vmatpush1.bf16.msra.mxu0 %v142
    %152 = vmatprep.subr.bf16.mxu0 0
    %153 = vmatpush1.bf16.msra.mxu0 %v143
    %154 = vmatprep.subr.bf16.mxu0 0
    %155 = vmatpush1.bf16.msra.mxu0 0
    %156 = vmatprep.subr.bf16.mxu0 0
    %157 = vmatpush1.bf16.msra.mxu0 0
    %158 = vmatprep.subr.bf16.mxu0 0
    %159 = vmatpush1.bf16.msra.mxu0 0
    %160 = vmatprep.subr.bf16.mxu0 0
    %161 = vmatpush1.bf16.msra.mxu0 0
    %162 = vmatprep.subr.bf16.mxu0 0
    %163 = vmatpush1.bf16.msra.mxu0 0
    %164 = vmatprep.subr.bf16.mxu0 0
    %165 = vmatpush1.bf16.msra.mxu0 0
    %166 = vmatprep.subr.bf16.mxu0 0
    %167 = vmatpush1.bf16.msra.mxu0 0
    %168 = vmatprep.subr.bf16.mxu0 0
    %169 = vmatpush1.bf16.msra.mxu0 0
    %170 = vmatprep.subr.bf16.mxu0 0
    %171 = vmatpush1.bf16.msra.mxu0 0
    %172 = vmatprep.subr.bf16.mxu0 0
    %173 = vmatpush1.bf16.msra.mxu0 0
    %174 = vmatprep.subr.bf16.mxu0 0
    %175 = vmatpush1.bf16.msra.mxu0 0
    %176 = vmatprep.subr.bf16.mxu0 0
    %177 = vmatpush1.bf16.msra.mxu0 0
    %178 = vmatprep.subr.bf16.mxu0 0
    %179 = vmatpush1.bf16.msra.mxu0 0
    %180 = vmatprep.subr.bf16.mxu0 0
    %181 = vmatpush1.bf16.msra.mxu0 0
    %182 = vmatprep.mubr.bf16.mxu0 0
    %183 = vmatmul.mubr.bf16.gmra.mrb[0].mxu0 %v148
    %v184 = vpop.f32.mrb[0].mxu0
    %v185 = vadd.f32 %v132, %v184
    %v186 = vpop.f32.mrb[0].mxu0
    %v187 = vpop.f32.mrb[0].mxu0
    %v188 = vpop.f32.mrb[0].mxu0
    %189 = vdwg.mxu0
    %v190 = vtanh.pop %v185
    %v191 = vpack.c.bf16 %v190, %v190
    %v192 = vld [vmem:[%s5] sm:$0xf]
    %v193 = vld [vmem:[%s5 + $0x4] sm:$0xf]
    %v194 = vld [vmem:[%s5 + $0x8] sm:$0xf]
    %v195 = vld [vmem:[%s5 + $0xc] sm:$0xf]
    %v196 = vld [vmem:[%s6] sm:$0x1]
    %v198 = vlaneseq
    %v199 = vshrl.u32 %v198, 7
    %v200 = vsub.s32 0, %v199
    %v201 = vrot.slane %v196, %v200
    %v207 = vunpack.c.l.b16 %v192
    %v208 = vunpack.c.l.b16 %v193
    %v209 = vunpack.c.l.b16 %v194
    %v210 = vunpack.c.l.b16 %v195
    %v211 = vpack.c.b16 %v208, %v207
    %v212 = vpack.c.b16 %v210, %v209
    %v216 = vsel %vm146, %v191, 0
    %218 = vmatprep.subr.bf16.mxu0 0
    %219 = vmatpush1.bf16.msra.mxu0 %v211
    %220 = vmatprep.subr.bf16.mxu0 0
    %221 = vmatpush1.bf16.msra.mxu0 %v212
    %222 = vmatprep.subr.bf16.mxu0 0
    %223 = vmatpush1.bf16.msra.mxu0 0
    %224 = vmatprep.subr.bf16.mxu0 0
    %225 = vmatpush1.bf16.msra.mxu0 0
    %226 = vmatprep.subr.bf16.mxu0 0
    %227 = vmatpush1.bf16.msra.mxu0 0
    %228 = vmatprep.subr.bf16.mxu0 0
    %229 = vmatpush1.bf16.msra.mxu0 0
    %230 = vmatprep.subr.bf16.mxu0 0
    %231 = vmatpush1.bf16.msra.mxu0 0
    %232 = vmatprep.subr.bf16.mxu0 0
    %233 = vmatpush1.bf16.msra.mxu0 0
    %234 = vmatprep.subr.bf16.mxu0 0
    %235 = vmatpush1.bf16.msra.mxu0 0
    %236 = vmatprep.subr.bf16.mxu0 0
    %237 = vmatpush1.bf16.msra.mxu0 0
    %238 = vmatprep.subr.bf16.mxu0 0
    %239 = vmatpush1.bf16.msra.mxu0 0
    %240 = vmatprep.subr.bf16.mxu0 0
    %241 = vmatpush1.bf16.msra.mxu0 0
    %242 = vmatprep.subr.bf16.mxu0 0
    %243 = vmatpush1.bf16.msra.mxu0 0
    %244 = vmatprep.subr.bf16.mxu0 0
    %245 = vmatpush1.bf16.msra.mxu0 0
    %246 = vmatprep.subr.bf16.mxu0 0
    %247 = vmatpush1.bf16.msra.mxu0 0
    %248 = vmatprep.subr.bf16.mxu0 0
    %249 = vmatpush1.bf16.msra.mxu0 0
    %250 = vmatprep.mubr.bf16.mxu0 0
    %251 = vmatmul.mubr.bf16.gmra.mrb[0].mxu0 %v216
    %v252 = vpop.f32.mrb[0].mxu0
    %v253 = vadd.f32 %v201, %v252
    %v254 = vpop.f32.mrb[0].mxu0
    %v255 = vpop.f32.mrb[0].mxu0
    %v256 = vpop.f32.mrb[0].mxu0
    %257 = vdwg.mxu0
    %v258 = vtanh.pop %v253
    %259 = vst.msk [vmem:[#allocation2] sm:$0xff] %vm146, %v258
    // Predicated region
    $region30: #{tpu_custom_call.1} parent=1 // pred_check
      _
    $region31: #{tpu_custom_call.1} parent=1 // pred_check_branch
      %261 = sbr.rel (0) target = $region33
    $region32: #{tpu_custom_call.1} parent=1 // pred_region
      %s263 = ssub.s32 128, 128
      %264 = vsyncadd [#allocation3], %s263
      %s266 = sshll.u32 [#allocation2], 4
      %s267 = int_to_ptr.vmem [resolvable:$true] %s266
      %269 = dma.vmem_to_hbm [thread:$0]  %s267, 128, %s7, [#allocation3]
    $region33: #{tpu_custom_call.1} parent=1 // pred_fallthru
      _
    // Predicated region
    $region34: #{tpu_custom_call.1} parent=1 // pred_check
      _
    $region35: #{tpu_custom_call.1} parent=1 // pred_check_branch
      %271 = sbr.rel (0) target = $region37
    $region36: #{tpu_custom_call.1} parent=1 // pred_region
      %272 = dma.done [#allocation3], 128
    $region37: #{tpu_custom_call.1} parent=1 // pred_fallthru
      _
    %273 = vsyncpa [#allocation3], 1

</llo_original>
